<compile_context>
chip_gen: v7x
topology: tpu7x:2x2x1
jax: 0.10.0
libtpu: 0.0.40
codegen_flags: <defaults>
</compile_context>

<pallas_src>
import jax
import jax.numpy as jnp
from jax.experimental import pallas as pl
from jax.experimental.pallas import tpu as pltpu


def linear_kernel(x_ref, wb_ref, o_ref):
    # y = x @ W^T + b for in_features == 1, as an outer-product broadcast:
    # (B, 1) * (1, OUT) -> (B, OUT) on the VPU, then add bias row.
    x = x_ref[...].astype(jnp.float32)      # (B, 1)
    w = wb_ref[0:1, :]                      # (1, OUT)  row 0 = W^T
    b = wb_ref[1:2, :]                      # (1, OUT)  row 1 = bias
    o_ref[...] = (x * w + b).astype(o_ref.dtype)


def pack_params(weight, bias):
    """One-time (param-init-time) packing.

    weight: (OUT, IN=1) in PyTorch convention, bias: (OUT,).
    Returns a single (2, OUT) f32 array: row 0 = W^T, row 1 = bias.
    Do NOT call this per forward pass.
    """
    out_f = weight.shape[0]
    w_row = weight.astype(jnp.float32).reshape(1, out_f)   # (1, OUT) == W^T for IN=1
    b_row = bias.astype(jnp.float32).reshape(1, out_f)     # (1, OUT)
    return jnp.concatenate([w_row, b_row], axis=0)          # (2, OUT)


def linear_forward(x, wb):
    """x: (B, 1); wb: (2, OUT) packed params (see pack_params)."""
    B = x.shape[0]
    out_f = wb.shape[1]
    vmem_spec = pl.BlockSpec(memory_space=pltpu.MemorySpace.VMEM)
    return pl.pallas_call(
        linear_kernel,
        out_shape=jax.ShapeDtypeStruct((B, out_f), x.dtype),
        in_specs=[vmem_spec, vmem_spec],
        out_specs=vmem_spec,
    )(x, wb)


if __name__ == "__main__":
    key = jax.random.PRNGKey(0)
    k_x, k_w, k_b = jax.random.split(key, 3)

    B, IN, OUT = 8, 1, 10
    # Deterministic parameter init, mimicking nn.Linear's U(-1/sqrt(in), 1/sqrt(in)).
    bound = 1.0 / (IN ** 0.5)
    weight = jax.random.uniform(k_w, (OUT, IN), jnp.float32, -bound, bound)
    bias = jax.random.uniform(k_b, (OUT,), jnp.float32, -bound, bound)

    x = jax.random.normal(k_x, (B, IN), jnp.float32)

    # One-time packing (outside the hot path).
    wb = pack_params(weight, bias)

    out = linear_forward(x, wb)
    out = jax.block_until_ready(out)

    # Reference check in plain JAX.
    ref = x @ weight.T + bias
    assert out.shape == (B, OUT)
    assert jnp.allclose(out, ref, atol=1e-5, rtol=1e-5)
    print("KERNEL_OK")
</pallas_src>

<mosaic_0001>
module attributes {stable_mosaic.version = 11 : i64} {
  func.func @linear_kernel(%arg0: memref<8x1xf32, #tpu.memory_space<vmem>>, %arg1: memref<2x10xf32, #tpu.memory_space<vmem>>, %arg2: memref<8x10xf32, #tpu.memory_space<vmem>>) attributes {dimension_semantics = [], scalar_prefetch = 0 : i64, scratch_operands = 0 : i64, tpu.core_type = #tpu.core_type<tc>} {
    %c0 = arith.constant 0 : index
    %c0_0 = arith.constant 0 : index
    %0 = vector.load %arg0[%c0, %c0_0] : memref<8x1xf32, #tpu.memory_space<vmem>>, vector<8x1xf32>
    %c0_1 = arith.constant 0 : index
    %c0_2 = arith.constant 0 : index
    %1 = vector.load %arg1[%c0_1, %c0_2] : memref<2x10xf32, #tpu.memory_space<vmem>>, vector<1x10xf32>
    %c1 = arith.constant 1 : index
    %c0_3 = arith.constant 0 : index
    %2 = vector.load %arg1[%c1, %c0_3] : memref<2x10xf32, #tpu.memory_space<vmem>>, vector<1x10xf32>
    %3 = vector.broadcast %0 : vector<8x1xf32> to vector<8x10xf32>
    %4 = vector.broadcast %1 : vector<1x10xf32> to vector<8x10xf32>
    %5 = arith.mulf %3, %4 : vector<8x10xf32>
    %6 = vector.broadcast %2 : vector<1x10xf32> to vector<8x10xf32>
    %7 = arith.addf %5, %6 : vector<8x10xf32>
    %c0_4 = arith.constant 0 : index
    %c0_5 = arith.constant 0 : index
    %8 = vector.load %arg2[%c0_4, %c0_5] : memref<8x10xf32, #tpu.memory_space<vmem>>, vector<8x10xf32>
    tpu.vector_store %arg2[%c0_4, %c0_5], %7 {strides = array<i32>} : memref<8x10xf32, #tpu.memory_space<vmem>>, vector<8x10xf32>,
    return
  }
}

</mosaic_0001>

<llo_original>
// kernel: tpu_custom_call.1
$region0: #{tpu_custom_call.1}
  #allocation0 [shape = 'u32[]', space=smem, size = 0x4, offset = 0x4, fixed_abs, tag = 'smem constant byte address 0x4 - core index']
  #allocation1 [shape = 'u32[144,128]{1,0:T(1,128)}', space=vmem, size = 0x12000, scoped, tag = 'internal scratch']
  %s0 = inlined_call_operand.vmem [shape: f32[8,1], index: 0, kind: input, shape index: {}]
  %s1 = inlined_call_operand.vmem [shape: f32[2,10], index: 1, kind: input, shape index: {}]
  %s2 = inlined_call_operand.hbm [shape: f32[8,10], index: 2, kind: output, shape index: {}]
  %s3 = sld [smem:[#allocation0]]
  $region18: #{tpu_custom_call.1} parent=0
    _
  %s5 = ssub.s32 1, %s3
  %s6 = scalar_select 0, %s5, %s3
  $region1: #{tpu_custom_call.1} parent=0
    #allocation2 [shape = 'u8[4096]{0}', space=vmem, size = 0x1000, scoped, tag = 'output window, operand 0, single buffered']
    #allocation3 [shape = 's32[1]{0}', space=sflag, size = 0x4, scoped, tag = 'scoped memory for tpu_custom_call.1']
    %7 = vsyncpa [#allocation3], 0
    // Predicated region
    $region2: #{tpu_custom_call.1} parent=1 // pred_check
      _
    $region3: #{tpu_custom_call.1} parent=1 // pred_check_branch
      %9 = sbr.rel (0) target = $region5
    $region4: #{tpu_custom_call.1} parent=1 // pred_region
      _
    $region5: #{tpu_custom_call.1} parent=1 // pred_fallthru
      _
    // Predicated region
    $region6: #{tpu_custom_call.1} parent=1 // pred_check
      _
    $region7: #{tpu_custom_call.1} parent=1 // pred_check_branch
      %11 = sbr.rel (0) target = $region9
    $region8: #{tpu_custom_call.1} parent=1 // pred_region
      _
    $region9: #{tpu_custom_call.1} parent=1 // pred_fallthru
      _
    %v12 = vld [vmem:[%s0] sm:$0xff]
    %v13 = vld [vmem:[%s1] sm:$0x1]
    %v14 = vld [vmem:[%s1 + $0x1] sm:$0x1]
    %16 = vset.pattern.permute.xlu0 0
    %17 = vperm.xlu0 %16, %v12
    %v18 = vpop.permute.xlu0 %17
    %v20 = vlaneseq
    %v21 = vshrl.u32 %v20, 7
    %v22 = vsub.s32 0, %v21
    %v23 = vrot.slane %v13, %v22
    %v24 = vmul.f32 %v18, %v23
    %v25 = vlaneseq
    %v26 = vshrl.u32 %v25, 7
    %v27 = vsub.s32 0, %v26
    %v28 = vrot.slane %v14, %v27
    %v29 = vadd.f32 %v24, %v28
    %vm30 = vcmask 80896
    %31 = vst.msk [vmem:[#allocation2] sm:$0xff] %vm30, %v29
    // Predicated region
    $region10: #{tpu_custom_call.1} parent=1 // pred_check
      _
    $region11: #{tpu_custom_call.1} parent=1 // pred_check_branch
      %33 = sbr.rel (0) target = $region13
    $region12: #{tpu_custom_call.1} parent=1 // pred_region
      %s35 = ssub.s32 128, 128
      %36 = vsyncadd [#allocation3], %s35
      %s38 = sshll.u32 [#allocation2], 4
      %s39 = int_to_ptr.vmem [resolvable:$true] %s38
      %41 = dma.vmem_to_hbm [thread:$0]  %s39, 128, %s2, [#allocation3]
    $region13: #{tpu_custom_call.1} parent=1 // pred_fallthru
      _
    // Predicated region
    $region14: #{tpu_custom_call.1} parent=1 // pred_check
      _
    $region15: #{tpu_custom_call.1} parent=1 // pred_check_branch
      %43 = sbr.rel (0) target = $region17
    $region16: #{tpu_custom_call.1} parent=1 // pred_region
      %44 = dma.done [#allocation3], 128
    $region17: #{tpu_custom_call.1} parent=1 // pred_fallthru
      _
    %45 = vsyncpa [#allocation3], 1

</llo_original>
